<compile_context>
chip_gen: v6e
topology: v6e:2x2x1
jax: 0.10.0
libtpu: 0.0.40
codegen_flags: <defaults>
</compile_context>

<pallas_src>
import jax
import jax.numpy as jnp
from jax.experimental import pallas as pl
from jax.experimental.pallas import tpu as pltpu


def _copy_kernel(x_ref, o_ref):
    # Identity copy: the channel permutation is expressed by BlockSpecs/grid.
    o_ref[...] = x_ref[...]


def _pick_hw_tile(cpg, hw, itemsize, *, target_block_bytes=2 << 20,
                  other_steps=1, min_steps=8):
    """Lane tile: a multiple of 128 dividing hw (or the full hw), in budget."""
    cands = sorted({t for t in range(128, hw + 1, 128) if hw % t == 0} | {hw},
                   reverse=True)                       # descending
    budget = max(target_block_bytes // (cpg * itemsize), 128)
    in_budget = [t for t in cands if t <= budget] or [cands[-1]]
    # Largest in-budget tile that still leaves >= min_steps grid steps (keeps
    # both v7x TensorCores fed); otherwise just the largest in-budget tile.
    for t in in_budget:
        if other_steps * (hw // t) >= min_steps:
            return t
    return in_budget[0]


def channel_shuffle_ref(x, groups):
    # Pure-JAX reference mirroring the PyTorch forward exactly.
    n, c, h, w = x.shape
    x = x.reshape(n, groups, c // groups, h, w)
    x = jnp.transpose(x, (0, 2, 1, 3, 4))
    return x.reshape(n, c, h, w)


def channel_shuffle(x, groups, *, hw_tile=None, target_block_bytes=2 << 20):
    n, c, h, w = x.shape
    assert c % groups == 0, "channels must be divisible by groups"
    cpg = c // groups
    hw = h * w
    itemsize = jnp.dtype(x.dtype).itemsize

    if hw < 128 or groups == 1:
        # Lane-sparse output (every store masked) or no-op permutation: let
        # XLA do the transpose-copy instead of a Pallas kernel.
        return channel_shuffle_ref(x, groups)

    if hw_tile is None:
        hw_tile = _pick_hw_tile(cpg, hw, itemsize,
                                target_block_bytes=target_block_bytes,
                                other_steps=n * groups)
    assert hw % hw_tile == 0 and (hw_tile % 128 == 0 or hw_tile == hw), (
        "hw_tile must divide H*W and be a multiple of 128 (or full extent)")
    n_hw_tiles = hw // hw_tile

    # Free (contiguous) views: lane axis = H*W, channel groups exposed on the
    # input; the output lane axis carries (groups, H*W) so the shuffled
    # channel order falls out of a plain reshape afterwards.
    x4 = x.reshape(n, groups, cpg, hw)
    nbytes = n * c * hw * itemsize

    out3 = pl.pallas_call(
        _copy_kernel,
        out_shape=jax.ShapeDtypeStruct((n, cpg, groups * hw), x.dtype),
        grid=(n, groups, n_hw_tiles),
        in_specs=[pl.BlockSpec((None, None, cpg, hw_tile),
                               lambda i, g, t: (i, g, 0, t))],
        out_specs=pl.BlockSpec((None, cpg, hw_tile),
                               lambda i, g, t: (i, 0, g * n_hw_tiles + t)),
        compiler_params=pltpu.CompilerParams(
            dimension_semantics=("parallel", "parallel", "parallel")),
        cost_estimate=pl.CostEstimate(flops=0, transcendentals=0,
                                      bytes_accessed=2 * nbytes),
    )(x4)

    # (n, cpg, groups*hw) already has channel j = cp*groups + g in order.
    return out3.reshape(n, c, h, w)


if __name__ == "__main__":
    key = jax.random.PRNGKey(0)

    # Spec-sized test: (2, 4, 16, 16), groups=2.
    groups = 2
    x = jax.random.normal(key, (2, 4, 16, 16), dtype=jnp.float32)
    out = jax.block_until_ready(channel_shuffle(x, groups))
    ref = channel_shuffle_ref(x, groups)
    assert out.shape == ref.shape
    assert jnp.array_equal(out, ref), "mismatch vs reference channel shuffle"

    # Multi-tile path: several lane tiles per (image, group), all grid axes > 1.
    groups2 = 4
    x2 = jax.random.normal(key, (2, 8, 16, 32), dtype=jnp.float32)
    out2 = jax.block_until_ready(channel_shuffle(x2, groups2, hw_tile=128))
    ref2 = channel_shuffle_ref(x2, groups2)
    assert jnp.array_equal(out2, ref2), "mismatch on tiled path"

    # Narrow-group bf16 path (C//groups smaller than the sublane packing).
    groups3 = 3
    x3 = jax.random.normal(key, (2, 6, 8, 32), dtype=jnp.bfloat16)
    out3 = jax.block_until_ready(channel_shuffle(x3, groups3))
    ref3 = channel_shuffle_ref(x3, groups3)
    assert jnp.array_equal(out3, ref3), "mismatch on bf16 path"

    print("KERNEL_OK")
</pallas_src>

<mosaic_0001>
module attributes {stable_mosaic.version = 11 : i64} {
  func.func @_copy_kernel(%arg0: i32, %arg1: i32, %arg2: i32, %arg3: memref<1x1x2x128xf32, #tpu.memory_space<vmem>>, %arg4: memref<1x2x128xf32, #tpu.memory_space<vmem>>) attributes {dimension_semantics = [#tpu.dimension_semantics<parallel>, #tpu.dimension_semantics<parallel>, #tpu.dimension_semantics<parallel>], iteration_bounds = array<i64: 2, 2, 2>, scalar_prefetch = 0 : i64, scratch_operands = 0 : i64, tpu.core_type = #tpu.core_type<tc>, window_params = [{transform_indices = @transform_0, window_bounds = array<i64: 1, 1, 2, 128>}, {transform_indices = @transform_1, window_bounds = array<i64: 1, 2, 128>}]} {
    %c0 = arith.constant 0 : index
    %c0_0 = arith.constant 0 : index
    %c0_1 = arith.constant 0 : index
    %c0_2 = arith.constant 0 : index
    %0 = vector.load %arg3[%c0, %c0_0, %c0_1, %c0_2] : memref<1x1x2x128xf32, #tpu.memory_space<vmem>>, vector<1x1x2x128xf32>
    %1 = vector.shape_cast %0 : vector<1x1x2x128xf32> to vector<2x128xf32>
    %c0_3 = arith.constant 0 : index
    %c0_4 = arith.constant 0 : index
    %c0_5 = arith.constant 0 : index
    %2 = vector.load %arg4[%c0_3, %c0_4, %c0_5] : memref<1x2x128xf32, #tpu.memory_space<vmem>>, vector<1x2x128xf32>
    %3 = vector.shape_cast %2 : vector<1x2x128xf32> to vector<2x128xf32>
    %4 = vector.shape_cast %1 : vector<2x128xf32> to vector<1x2x128xf32>
    tpu.vector_store %arg4[%c0_3, %c0_4, %c0_5], %4 {strides = array<i32>} : memref<1x2x128xf32, #tpu.memory_space<vmem>>, vector<1x2x128xf32>,
    return
  }
  func.func @transform_0(%arg0: i32, %arg1: i32, %arg2: i32) -> (i32, i32, i32, i32) {
    %c0_i32 = arith.constant 0 : i32
    %c0_i32_0 = arith.constant 0 : i32
    return %arg0, %arg1, %c0_i32, %arg2 : i32, i32, i32, i32
  }
  func.func @transform_1(%arg0: i32, %arg1: i32, %arg2: i32) -> (i32, i32, i32) {
    %c2_i32 = arith.constant 2 : i32
    %0 = arith.muli %arg1, %c2_i32 : i32
    %1 = arith.addi %0, %arg2 : i32
    %c0_i32 = arith.constant 0 : i32
    %c0_i32_0 = arith.constant 0 : i32
    return %arg0, %c0_i32, %1 : i32, i32, i32
  }
}

</mosaic_0001>

<llo_original>
// kernel: tpu_custom_call.1
$region0: #{tpu_custom_call.1}
  #allocation0 [shape = 'u32[]', space=smem, size = 0x4, offset = 0x4, fixed_abs, tag = 'smem constant byte address 0x4 - core index']
  #allocation1 [shape = 'u32[144,128]{1,0:T(1,128)}', space=vmem, size = 0x12000, scoped, tag = 'internal scratch']
  %s0 = inlined_call_operand.hbm [shape: f32[2,2,2,256], index: 0, kind: input, shape index: {}]
  %s1 = inlined_call_operand.hbm [shape: f32[2,2,512], index: 1, kind: output, shape index: {}]
  %s2 = sld [smem:[#allocation0]]
  $region41: #{tpu_custom_call.1} parent=0
    _
  %s4 = ssub.s32 1, %s2
  %s5 = scalar_select 0, %s4, %s2
  $region1: #{tpu_custom_call.1} parent=0
    #allocation2 [shape = 'u8[2048]{0}', space=vmem, size = 0x800, scoped, tag = 'input window, operand 0']
    #allocation3 [shape = 's32[2]{0}', space=sflag, size = 0x8, scoped, tag = 'scoped memory for tpu_custom_call.1']
    #allocation4 [shape = 's32[2]{0}', space=sflag, size = 0x8, scoped, tag = 'scoped memory for tpu_custom_call.1']
    #allocation5 [shape = 'u8[2048]{0}', space=vmem, size = 0x800, scoped, tag = 'output window, operand 0']
    %6 = vsyncpa [#allocation3], 0
    %s7 = scalar_lea.sflag [#allocation3], 1
    %8 = vsyncpa %s7, 0
    %9 = vsyncpa [#allocation4], 0
    %s10 = scalar_lea.sflag [#allocation4], 1
    %11 = vsyncpa %s10, 0
    loop: start=0, step=1, limit=10
    $region2: #{tpu_custom_call.1} parent=1 // loop_pre_header
      _
    $region3: #{tpu_custom_call.1} parent=1 // loop_header
      %s13 = sphi 0, %s17
      %p14 = scmp.ge.s32.totalorder %s13, 10
      %s20 = sphi 0, %s39
      %s21 = sphi 0, %s35
      %s22 = sphi 0, %s31
      %s23 = sphi 0, %s20
      %s24 = sphi 0, %s21
      %s25 = sphi 0, %s22
      %s26 = sphi 0, %s23
      %s27 = sphi 0, %s24
      %s28 = sphi 0, %s25
      %s46 = sphi 0, %s48
      %s49 = sphi 0, %s46
      %s50 = sphi 0, %s49
      %s66 = sphi 0, %s50
      %s78 = sphi 0, %s80
      %s81 = sphi 0, %s78
      %s82 = sphi 0, %s81
      %s98 = sphi 0, %s82
    $region4: #{tpu_custom_call.1} parent=1 // loop_header_branch
      %16 = sbr.rel (%p14) target = $region8
    $region5: #{tpu_custom_call.1} parent=1 // loop_body
      %s18 = ssub.s32 %s13, 1
      %s19 = ssub.s32 %s13, 2
      %s29 = sadd.s32 1, %s22
      %p30 = scmp.ge.s32.totalorder %s29, 2
      %s31 = scalar_select %p30, 0, %s29
      %s32 = sadd.s32 1, %s21
      %s33 = scalar_select %p30, %s32, %s21
      %p34 = scmp.ge.s32.totalorder %s33, 2
      %s35 = scalar_select %p34, 0, %s33
      %s36 = sadd.s32 1, %s20
      %s37 = scalar_select %p34, %s36, %s20
      %p38 = scmp.ge.s32.totalorder %s37, 2
      %s39 = scalar_select %p38, 0, %s37
      %s40 = ssub.s32 %s20, %s39
      %s41 = ssub.s32 %s21, %s35
      %s42 = sor.u32 %s40, %s41
      %s43 = ssub.s32 %s22, %s31
      %s44 = sor.u32 %s42, %s43
      %p45 = scmp.eq.s32.totalorder %s44, 0
      %s47 = sadd.s32 %s46, 1
      %s48 = scalar_select %p45, %s46, %s47
      %p51 = pneg %p45
      %p52 = scmp.eq.s32.totalorder %s13, 7
      %p53 = por %p51, %p52
      %p54 = scmp.ne.s32.totalorder %s46, %s49
      %p55 = scmp.eq.s32.totalorder %s13, 0
      %p56 = por %p54, %p55
      %p57 = scmp.ne.s32.totalorder %s46, %s49
      %p58 = scmp.eq.s32.totalorder %s18, 7
      %p59 = por %p57, %p58
      %p60 = scmp.ne.s32.totalorder %s49, %s50
      %p61 = scmp.eq.s32.totalorder %s18, 0
      %p62 = por %p60, %p61
      %p63 = scmp.ne.s32.totalorder %s49, %s50
      %p64 = scmp.eq.s32.totalorder %s19, 7
      %p65 = por %p63, %p64
      %p67 = scmp.ne.s32.totalorder %s50, %s66
      %p68 = scmp.eq.s32.totalorder %s19, 0
      %p69 = por %p67, %p68
      %s70 = smul.u32 %s21, 2
      %s71 = sadd.s32 %s70, %s22
      %s72 = smul.u32 %s35, 2
      %s73 = sadd.s32 %s72, %s31
      %s74 = ssub.s32 %s20, %s39
      %s75 = ssub.s32 %s71, %s73
      %s76 = sor.u32 %s74, %s75
      %p77 = scmp.eq.s32.totalorder %s76, 0
      %s79 = sadd.s32 %s78, 1
      %s80 = scalar_select %p77, %s78, %s79
      %p83 = pneg %p77
      %p84 = scmp.eq.s32.totalorder %s13, 7
      %p85 = por %p83, %p84
      %p86 = scmp.ne.s32.totalorder %s78, %s81
      %p87 = scmp.eq.s32.totalorder %s13, 0
      %p88 = por %p86, %p87
      %p89 = scmp.ne.s32.totalorder %s78, %s81
      %p90 = scmp.eq.s32.totalorder %s18, 7
      %p91 = por %p89, %p90
      %p92 = scmp.ne.s32.totalorder %s81, %s82
      %p93 = scmp.eq.s32.totalorder %s18, 0
      %p94 = por %p92, %p93
      %p95 = scmp.ne.s32.totalorder %s81, %s82
      %p96 = scmp.eq.s32.totalorder %s19, 7
      %p97 = por %p95, %p96
      %p99 = scmp.ne.s32.totalorder %s82, %s98
      %p100 = scmp.eq.s32.totalorder %s19, 0
      %p101 = por %p99, %p100
      %p102 = scmp.le.s32.totalorder 1, %s13
      %p103 = scmp.lt.s32.totalorder %s13, 9
      %p104 = pnand %p102, %p103
      %p105 = pneg %p104
      // Predicated region
      $region9: #{tpu_custom_call.1} parent=5 // pred_check
        _
      $region10: #{tpu_custom_call.1} parent=5 // pred_check_branch
        %107 = sbr.rel (%p104) target = $region12
      $region11: #{tpu_custom_call.1} parent=5 // pred_region
        %s108 = ssub.s32 %s13, 1
      $region12: #{tpu_custom_call.1} parent=5 // pred_fallthru
        _
      %p109 = scmp.lt.s32.totalorder %s13, 8
      // Predicated region
      $region13: #{tpu_custom_call.1} parent=5 // pred_check
        %p110 = pneg %p109
      $region14: #{tpu_custom_call.1} parent=5 // pred_check_branch
        %112 = sbr.rel (%p110) target = $region16
      $region15: #{tpu_custom_call.1} parent=5 // pred_region
        // Predicated region
        $region17: #{tpu_custom_call.1} parent=15 // pred_check
          %p113 = pneg %p56
        $region18: #{tpu_custom_call.1} parent=15 // pred_check_branch
          %115 = sbr.rel (%p113) target = $region20
        $region19: #{tpu_custom_call.1} parent=15 // pred_region
          %s116 = sand.u32 %s46, 1
          %s117 = scalar_lea.sflag [#allocation3], %s116
          %s118 = sand.u32 %s46, 1
          %s119 = smul.addr %s118, 2
          %s120 = scalar_lea.vmem [#allocation2], %s119
          %s122 = ssub.s32 32, 32
          %123 = vsyncadd %s117, %s122
          %s124 = smul.addr %s21, 2
          %s125 = sadd.s32 %s22, %s124
          %s126 = smul.addr %s20, 4
          %s127 = sadd.s32 %s125, %s126
          %s128 = smul.addr %s127, 32
          %s129 = scalar_lea.hbm %s0, %s128
          %s131 = sshll.u32 %s120, 4
          %s132 = int_to_ptr.vmem [resolvable:$true] %s131
          %134 = dma.hbm_to_vmem [thread:$0]  %s129, 32, %s132, %s117
        $region20: #{tpu_custom_call.1} parent=15 // pred_fallthru
          _
      $region16: #{tpu_custom_call.1} parent=5 // pred_fallthru
        _
      %p135 = scmp.le.s32.totalorder 1, %s13
      %p136 = scmp.lt.s32.totalorder %s13, 9
      %p137 = pnand %p135, %p136
      %p138 = pneg %p137
      // Predicated region
      $region21: #{tpu_custom_call.1} parent=5 // pred_check
        _
      $region22: #{tpu_custom_call.1} parent=5 // pred_check_branch
        %140 = sbr.rel (%p137) target = $region24
      $region23: #{tpu_custom_call.1} parent=5 // pred_region
        %s141 = ssub.s32 %s13, 1
        %s142 = sand.u32 %s49, 1
        %s143 = scalar_lea.sflag [#allocation3], %s142
        %s144 = sand.u32 %s49, 1
        %s145 = smul.addr %s144, 2
        %s146 = scalar_lea.vmem [#allocation2], %s145
        // Predicated region
        $region25: #{tpu_custom_call.1} parent=23 // pred_check
          %p147 = pneg %p62
        $region26: #{tpu_custom_call.1} parent=23 // pred_check_branch
          %149 = sbr.rel (%p147) target = $region28
        $region27: #{tpu_custom_call.1} parent=23 // pred_region
          %150 = dma.done %s143, 32
        $region28: #{tpu_custom_call.1} parent=23 // pred_fallthru
          _
        %s151 = sand.u32 %s49, 1
        %s152 = scalar_lea.sflag [#allocation3], %s151
        %s153 = sand.u32 %s49, 1
        %s154 = smul.addr %s153, 2
        %s155 = scalar_lea.vmem [#allocation2], %s154
        %p156 = pneg %p62
        %p157 = pneg %p59
        %p158 = pneg %p94
        %p159 = pneg %p91
        %s160 = sand.u32 %s81, 1
        %s161 = scalar_lea.sflag [#allocation4], %s160
        %s162 = sand.u32 %s81, 1
        %s163 = smul.addr %s162, 2
        %s164 = scalar_lea.vmem [#allocation5], %s163
        %s165 = smul.u32 %s24, 2
        %s166 = sadd.s32 %s165, %s25
        %v167 = vld [vmem:[%s146] sm:$0x3]
        %168 = vst [vmem:[%s164] sm:$0x3] %v167
        %s169 = sand.u32 %s81, 1
        %s170 = scalar_lea.sflag [#allocation4], %s169
        %s171 = sand.u32 %s81, 1
        %s172 = smul.addr %s171, 2
        %s173 = scalar_lea.vmem [#allocation5], %s172
        // Predicated region
        $region29: #{tpu_custom_call.1} parent=23 // pred_check
          %p174 = pneg %p91
        $region30: #{tpu_custom_call.1} parent=23 // pred_check_branch
          %176 = sbr.rel (%p174) target = $region32
        $region31: #{tpu_custom_call.1} parent=23 // pred_region
          %s177 = smul.u32 %s24, 2
          %s178 = sadd.s32 %s177, %s25
          %s180 = ssub.s32 32, 32
          %181 = vsyncadd %s170, %s180
          %s182 = smul.addr %s23, 4
          %s183 = sadd.s32 %s178, %s182
          %s184 = smul.addr %s183, 32
          %s185 = scalar_lea.hbm %s1, %s184
          %s187 = sshll.u32 %s173, 4
          %s188 = int_to_ptr.vmem [resolvable:$true] %s187
          %190 = dma.vmem_to_hbm [thread:$0]  %s188, 32, %s185, %s170
        $region32: #{tpu_custom_call.1} parent=23 // pred_fallthru
          _
      $region24: #{tpu_custom_call.1} parent=5 // pred_fallthru
        _
      %p191 = scmp.le.s32.totalorder 2, %s13
      // Predicated region
      $region33: #{tpu_custom_call.1} parent=5 // pred_check
        %p192 = pneg %p191
      $region34: #{tpu_custom_call.1} parent=5 // pred_check_branch
        %194 = sbr.rel (%p192) target = $region36
      $region35: #{tpu_custom_call.1} parent=5 // pred_region
        %s195 = ssub.s32 %s13, 2
        // Predicated region
        $region37: #{tpu_custom_call.1} parent=35 // pred_check
          %p196 = pneg %p97
        $region38: #{tpu_custom_call.1} parent=35 // pred_check_branch
          %198 = sbr.rel (%p196) target = $region40
        $region39: #{tpu_custom_call.1} parent=35 // pred_region
          %s199 = sand.u32 %s82, 1
          %s200 = scalar_lea.sflag [#allocation4], %s199
          %s201 = sand.u32 %s82, 1
          %s202 = smul.addr %s201, 2
          %s203 = scalar_lea.vmem [#allocation5], %s202
          %204 = dma.done %s200, 32
        $region40: #{tpu_custom_call.1} parent=35 // pred_fallthru
          _
      $region36: #{tpu_custom_call.1} parent=5 // pred_fallthru
        _
    $region6: #{tpu_custom_call.1} parent=1 // loop_footer
      %s17 = sadd.s32 1, %s13
    $region7: #{tpu_custom_call.1} parent=1 // loop_footer_branch
      %12 = sbr.rel target = $region3
    $region8: #{tpu_custom_call.1} parent=1 // loop_exit
      _
    %205 = vsyncpa [#allocation3], 1
    %s206 = scalar_lea.sflag [#allocation3], 1
    %207 = vsyncpa %s206, 1
    %208 = vsyncpa [#allocation4], 1
    %s209 = scalar_lea.sflag [#allocation4], 1
    %210 = vsyncpa %s209, 1

</llo_original>
